<compile_context>
chip_gen: v7x
topology: tpu7x:2x2x1
jax: 0.10.0
libtpu: 0.0.40
codegen_flags: <defaults>
</compile_context>

<pallas_src>
import jax
import jax.numpy as jnp
from jax.experimental import pallas as pl
from jax.experimental.pallas import tpu as pltpu


def _ffn_kernel(x_ref, w1_ref, b1_ref, w2_ref, b2_ref, o_ref, acc_ref):
    # x_ref:  (TM, D)
    # w1_ref: (D, TH), b1_ref: (1, TH)
    # w2_ref: (TH, D), b2_ref: (1, D)
    # o_ref:  (TM, D)
    # acc_ref:(TM, D) f32 scratch, accumulates over the H (reduction) grid axis.
    j = pl.program_id(1)

    @pl.when(j == 0)
    def _():
        acc_ref[...] = jnp.zeros_like(acc_ref)

    h = jnp.dot(x_ref[...], w1_ref[...], preferred_element_type=jnp.float32)
    h = h + b1_ref[...]                    # broadcast (1, TH) over rows
    h = h * jax.nn.sigmoid(h)              # Swish in f32 (sigmoid on EUP)
    acc_ref[...] += jnp.dot(h.astype(w2_ref.dtype), w2_ref[...],
                            preferred_element_type=jnp.float32)

    @pl.when(j == pl.num_programs(1) - 1)
    def _():
        o_ref[...] = (acc_ref[...] + b2_ref[...]).astype(o_ref.dtype)


def _round_up(n, m):
    return ((n + m - 1) // m) * m


def _choose_tile_h(H):
    """Largest H-tile that is a multiple of 128 and divides H; else full H."""
    for th in (512, 256, 128):
        if H % th == 0:
            return th
    return H


def _choose_tile_m(M, D, TH, *, bytes_per_elem=4,
                   vmem_budget_bytes=12 * 1024 * 1024):
    """Largest row tile whose working set fits a conservative VMEM budget."""
    # Double-buffered weight/bias tiles (fixed per step).
    fixed = 2 * (D * TH + TH + TH * D + D) * bytes_per_elem
    for tm in (1024, 512, 256, 128, 64, 32, 16, 8):
        if tm > max(8, _round_up(M, 8)):
            continue
        # double-buffered x and out tiles + f32 accumulator scratch
        per_tile = (2 * tm * D + 2 * tm * D + tm * D) * bytes_per_elem
        if fixed + per_tile <= vmem_budget_bytes:
            return tm
    return 8


def feed_forward(x, w1, b1, w2, b2, *, tile_m=None, tile_h=None):
    """FeedForwardModule forward (inference).

    Args:
      x:  (B, T, D)  float32.
      w1: (H, D)     float32  -- PyTorch nn.Linear(encoder_dim, H) weight.
      b1: (H,)       float32.
      w2: (D, H)     float32  -- PyTorch nn.Linear(H, encoder_dim) weight.
      b2: (D,)       float32.

    Returns:
      (B, T, D) float32.
    """
    # TODO(synk): Dropout (do1/do2, p=0.1) is inference-mode identity here; a
    # training variant would draw masks with pltpu.prng_seed/prng_random_bits.
    B, T, D = x.shape
    H = w1.shape[0]
    assert w1.shape == (H, D) and b1.shape == (H,)
    assert w2.shape == (D, H) and b2.shape == (D,)

    M = B * T
    x_flat = x.reshape(M, D)                 # no transposes: already channels-last
    w1_t = jnp.transpose(w1)                 # (D, H)  -- small, one-time
    w2_t = jnp.transpose(w2)                 # (H, D)
    b1_2d = b1.reshape(1, H)
    b2_2d = b2.reshape(1, D)

    if tile_h is None:
        tile_h = _choose_tile_h(H)
    tile_h = int(tile_h)
    if H % tile_h != 0:
        tile_h = H                           # fall back to un-tiled hidden dim

    if tile_m is None:
        tile_m = _choose_tile_m(M, D, tile_h)
    tile_m = max(8, min(int(tile_m), _round_up(M, 8)))   # sublane-aligned

    M_pad = _round_up(M, tile_m)
    if M_pad != M:
        x_flat = jnp.pad(x_flat, ((0, M_pad - M), (0, 0)))

    grid = (M_pad // tile_m, H // tile_h)

    out_flat = pl.pallas_call(
        _ffn_kernel,
        out_shape=jax.ShapeDtypeStruct((M_pad, D), x.dtype),
        grid_spec=pltpu.PrefetchScalarGridSpec(
            num_scalar_prefetch=0,
            grid=grid,
            in_specs=[
                pl.BlockSpec((tile_m, D), lambda i, j: (i, 0)),   # x tile (resident over j)
                pl.BlockSpec((D, tile_h), lambda i, j: (0, j)),   # W1^T tile
                pl.BlockSpec((1, tile_h), lambda i, j: (0, j)),   # b1 tile
                pl.BlockSpec((tile_h, D), lambda i, j: (j, 0)),   # W2^T tile
                pl.BlockSpec((1, D), lambda i, j: (0, 0)),        # b2 (resident)
            ],
            out_specs=pl.BlockSpec((tile_m, D), lambda i, j: (i, 0)),
            scratch_shapes=[pltpu.VMEM((tile_m, D), jnp.float32)],
        ),
        compiler_params=pltpu.CompilerParams(
            dimension_semantics=("parallel", "arbitrary"),
        ),
        cost_estimate=pl.CostEstimate(
            flops=4 * M_pad * D * H,                   # two matmuls
            transcendentals=M_pad * H,                 # sigmoid
            bytes_accessed=(2 * M_pad * D + 2 * D * H + H + D) * 4,
        ),
    )(x_flat, w1_t, b1_2d, w2_t, b2_2d)

    return out_flat[:M].reshape(B, T, D)


def _reference(x, w1, b1, w2, b2):
    # Pure-JAX reference with full-precision matmuls.
    h = jnp.einsum("btd,hd->bth", x, w1,
                   precision=jax.lax.Precision.HIGHEST) + b1
    h = h * jax.nn.sigmoid(h)
    return jnp.einsum("bth,dh->btd", h, w2,
                      precision=jax.lax.Precision.HIGHEST) + b2


def _make_params(key, D, H):
    k_w1, k_b1, k_w2, k_b2 = jax.random.split(key, 4)
    # PyTorch nn.Linear uniform init bounds: U(-1/sqrt(fan_in), 1/sqrt(fan_in)).
    bound1 = 1.0 / (D ** 0.5)
    w1 = jax.random.uniform(k_w1, (H, D), jnp.float32, -bound1, bound1)
    b1 = jax.random.uniform(k_b1, (H,), jnp.float32, -bound1, bound1)
    bound2 = 1.0 / (H ** 0.5)
    w2 = jax.random.uniform(k_w2, (D, H), jnp.float32, -bound2, bound2)
    b2 = jax.random.uniform(k_b2, (D,), jnp.float32, -bound2, bound2)
    return w1, b1, w2, b2


if __name__ == "__main__":
    key = jax.random.PRNGKey(0)
    k_x, k_p = jax.random.split(key, 2)

    # Shapes consistent with the module: (batch, time, encoder_dim),
    # expansion_factor=4.  time=15 exercises the padding / remainder path.
    B, T, D = 2, 15, 64
    E = 4
    H = D * E

    x = jax.random.normal(k_x, (B, T, D), dtype=jnp.float32)
    w1, b1, w2, b2 = _make_params(k_p, D, H)
    ref = _reference(x, w1, b1, w2, b2)

    # Run 1: force small tiles so the test exercises the 2-D grid (row tiling +
    # hidden-dim reduction with accumulator init/finalize).
    out = feed_forward(x, w1, b1, w2, b2, tile_m=8, tile_h=128)
    out = jax.block_until_ready(out)
    assert out.shape == (B, T, D)
    max_err = float(jnp.max(jnp.abs(out - ref)))
    assert jnp.allclose(out, ref, atol=1e-2, rtol=1e-2), max_err

    # Run 2: default (auto-chosen) tiles -- single-tile fast path.
    out2 = feed_forward(x, w1, b1, w2, b2)
    out2 = jax.block_until_ready(out2)
    max_err2 = float(jnp.max(jnp.abs(out2 - ref)))
    assert jnp.allclose(out2, ref, atol=1e-2, rtol=1e-2), max_err2

    print("KERNEL_OK")
</pallas_src>

<mosaic_0001>
module attributes {stable_mosaic.version = 11 : i64} {
  func.func @_ffn_kernel(%arg0: i32, %arg1: i32, %arg2: memref<8x64xf32, #tpu.memory_space<vmem>>, %arg3: memref<64x128xf32, #tpu.memory_space<vmem>>, %arg4: memref<1x128xf32, #tpu.memory_space<vmem>>, %arg5: memref<128x64xf32, #tpu.memory_space<vmem>>, %arg6: memref<1x64xf32, #tpu.memory_space<vmem>>, %arg7: memref<8x64xf32, #tpu.memory_space<vmem>>, %arg8: memref<8x64xf32, #tpu.memory_space<vmem>>) attributes {dimension_semantics = [#tpu.dimension_semantics<parallel>, #tpu.dimension_semantics<arbitrary>], iteration_bounds = array<i64: 4, 2>, scalar_prefetch = 0 : i64, scratch_operands = 1 : i64, tpu.core_type = #tpu.core_type<tc>, window_params = [{transform_indices = @transform_0, window_bounds = array<i64: 8, 64>}, {transform_indices = @transform_1, window_bounds = array<i64: 64, 128>}, {transform_indices = @transform_2, window_bounds = array<i64: 1, 128>}, {transform_indices = @transform_3, window_bounds = array<i64: 128, 64>}, {pipeline_mode = #tpu.pipeline_mode<synchronous>, transform_indices = @transform_4, window_bounds = array<i64: 1, 64>}, {transform_indices = @transform_5, window_bounds = array<i64: 8, 64>}]} {
    %c0_i32 = arith.constant 0 : i32
    %0 = arith.cmpi eq, %arg1, %c0_i32 : i32
    %1 = arith.extui %0 : i1 to i32
    %c0_i32_0 = arith.constant 0 : i32
    %2 = arith.cmpi ne, %1, %c0_i32_0 : i32
    scf.if %2 {
      %cst_15 = arith.constant 0.000000e+00 : f32
      %23 = vector.broadcast %cst_15 : f32 to vector<8x64xf32>
      %c0_16 = arith.constant 0 : index
      %c0_17 = arith.constant 0 : index
      %24 = vector.load %arg8[%c0_16, %c0_17] : memref<8x64xf32, #tpu.memory_space<vmem>>, vector<8x64xf32>
      tpu.vector_store %arg8[%c0_16, %c0_17], %23 {strides = array<i32>} : memref<8x64xf32, #tpu.memory_space<vmem>>, vector<8x64xf32>,
    } else {
    }
    %c0 = arith.constant 0 : index
    %c0_1 = arith.constant 0 : index
    %3 = vector.load %arg2[%c0, %c0_1] : memref<8x64xf32, #tpu.memory_space<vmem>>, vector<8x64xf32>
    %c0_2 = arith.constant 0 : index
    %c0_3 = arith.constant 0 : index
    %4 = vector.load %arg3[%c0_2, %c0_3] : memref<64x128xf32, #tpu.memory_space<vmem>>, vector<64x128xf32>
    %cst = arith.constant dense<0.000000e+00> : vector<8x128xf32>
    %5 = tpu.matmul %3, %4, %cst {dimension_numbers = #tpu.dot_dimension_numbers<[1], [0], [0], [1], [0, 0, 1, 1], [], []>} : vector<8x64xf32>, vector<64x128xf32>, vector<8x128xf32> -> vector<8x128xf32>
    %c0_4 = arith.constant 0 : index
    %c0_5 = arith.constant 0 : index
    %6 = vector.load %arg4[%c0_4, %c0_5] : memref<1x128xf32, #tpu.memory_space<vmem>>, vector<1x128xf32>
    %7 = vector.broadcast %6 : vector<1x128xf32> to vector<8x128xf32>
    %8 = arith.addf %5, %7 : vector<8x128xf32>
    %9 = arith.negf %8 : vector<8x128xf32>
    %10 = math.exp %9 : vector<8x128xf32>
    %cst_6 = arith.constant 1.000000e+00 : f32
    %11 = vector.broadcast %cst_6 : f32 to vector<8x128xf32>
    %12 = arith.addf %11, %10 : vector<8x128xf32>
    %13 = arith.divf %11, %12 : vector<8x128xf32>
    %14 = arith.mulf %8, %13 : vector<8x128xf32>
    %c0_7 = arith.constant 0 : index
    %c0_8 = arith.constant 0 : index
    %15 = vector.load %arg8[%c0_7, %c0_8] : memref<8x64xf32, #tpu.memory_space<vmem>>, vector<8x64xf32>
    %c0_9 = arith.constant 0 : index
    %c0_10 = arith.constant 0 : index
    %16 = vector.load %arg5[%c0_9, %c0_10] : memref<128x64xf32, #tpu.memory_space<vmem>>, vector<128x64xf32>
    %cst_11 = arith.constant dense<0.000000e+00> : vector<8x64xf32>
    %17 = tpu.matmul %14, %16, %cst_11 {dimension_numbers = #tpu.dot_dimension_numbers<[1], [0], [0], [1], [0, 0, 1, 1], [], []>} : vector<8x128xf32>, vector<128x64xf32>, vector<8x64xf32> -> vector<8x64xf32>
    %18 = arith.addf %15, %17 : vector<8x64xf32>
    %c0_12 = arith.constant 0 : index
    %c0_13 = arith.constant 0 : index
    %19 = vector.load %arg8[%c0_12, %c0_13] : memref<8x64xf32, #tpu.memory_space<vmem>>, vector<8x64xf32>
    tpu.vector_store %arg8[%c0_12, %c0_13], %18 {strides = array<i32>} : memref<8x64xf32, #tpu.memory_space<vmem>>, vector<8x64xf32>,
    %c1_i32 = arith.constant 1 : i32
    %20 = arith.cmpi eq, %arg1, %c1_i32 : i32
    %21 = arith.extui %20 : i1 to i32
    %c0_i32_14 = arith.constant 0 : i32
    %22 = arith.cmpi ne, %21, %c0_i32_14 : i32
    scf.if %22 {
      %c0_15 = arith.constant 0 : index
      %c0_16 = arith.constant 0 : index
      %23 = vector.load %arg8[%c0_15, %c0_16] : memref<8x64xf32, #tpu.memory_space<vmem>>, vector<8x64xf32>
      %c0_17 = arith.constant 0 : index
      %c0_18 = arith.constant 0 : index
      %24 = vector.load %arg6[%c0_17, %c0_18] : memref<1x64xf32, #tpu.memory_space<vmem>>, vector<1x64xf32>
      %25 = vector.broadcast %24 : vector<1x64xf32> to vector<8x64xf32>
      %26 = arith.addf %23, %25 : vector<8x64xf32>
      %c0_19 = arith.constant 0 : index
      %c0_20 = arith.constant 0 : index
      %27 = vector.load %arg7[%c0_19, %c0_20] : memref<8x64xf32, #tpu.memory_space<vmem>>, vector<8x64xf32>
      tpu.vector_store %arg7[%c0_19, %c0_20], %26 {strides = array<i32>} : memref<8x64xf32, #tpu.memory_space<vmem>>, vector<8x64xf32>,
    } else {
    }
    return
  }
  func.func @transform_0(%arg0: i32, %arg1: i32) -> (i32, i32) {
    %c0_i32 = arith.constant 0 : i32
    %c0_i32_0 = arith.constant 0 : i32
    return %arg0, %c0_i32 : i32, i32
  }
  func.func @transform_1(%arg0: i32, %arg1: i32) -> (i32, i32) {
    %c0_i32 = arith.constant 0 : i32
    %c0_i32_0 = arith.constant 0 : i32
    return %c0_i32, %arg1 : i32, i32
  }
  func.func @transform_2(%arg0: i32, %arg1: i32) -> (i32, i32) {
    %c0_i32 = arith.constant 0 : i32
    %c0_i32_0 = arith.constant 0 : i32
    return %c0_i32, %arg1 : i32, i32
  }
  func.func @transform_3(%arg0: i32, %arg1: i32) -> (i32, i32) {
    %c0_i32 = arith.constant 0 : i32
    %c0_i32_0 = arith.constant 0 : i32
    return %arg1, %c0_i32 : i32, i32
  }
  func.func @transform_4(%arg0: i32, %arg1: i32) -> (i32, i32) {
    %c0_i32 = arith.constant 0 : i32
    %c0_i32_0 = arith.constant 0 : i32
    %c0_i32_1 = arith.constant 0 : i32
    return %c0_i32, %c0_i32_0 : i32, i32
  }
  func.func @transform_5(%arg0: i32, %arg1: i32) -> (i32, i32) {
    %c0_i32 = arith.constant 0 : i32
    %c0_i32_0 = arith.constant 0 : i32
    return %arg0, %c0_i32 : i32, i32
  }
}

</mosaic_0001>

<llo_original>
// kernel: tpu_custom_call.1
$region0: #{tpu_custom_call.1}
  #allocation0 [shape = 'u32[]', space=smem, size = 0x4, offset = 0x4, fixed_abs, tag = 'smem constant byte address 0x4 - core index']
  #allocation1 [shape = 'u32[144,128]{1,0:T(1,128)}', space=vmem, size = 0x12000, scoped, tag = 'internal scratch']
  #allocation2 [shape = 'f32[8,64]{1,0:T(8,128)}', space=vmem, size = 0x1000, scoped, tag = 'scratch operand']
  %s0 = inlined_call_operand.vmem [shape: f32[32,64], index: 0, kind: input, shape index: {}]
  %s1 = inlined_call_operand.vmem [shape: f32[64,256], index: 1, kind: input, shape index: {}]
  %s2 = inlined_call_operand.vmem [shape: f32[1,256], index: 2, kind: input, shape index: {}]
  %s3 = inlined_call_operand.vmem [shape: f32[256,64], index: 3, kind: input, shape index: {}]
  %s4 = inlined_call_operand.vmem [shape: f32[1,64], index: 4, kind: input, shape index: {}]
  %s5 = inlined_call_operand.hbm [shape: f32[32,64], index: 5, kind: output, shape index: {}]
  %s6 = sld [smem:[#allocation0]]
  $region99: #{tpu_custom_call.1} parent=0
    _
  %s8 = ssub.s32 1, %s6
  %s9 = scalar_select 0, %s8, %s6
  $region1: #{tpu_custom_call.1} parent=0
    #allocation3 [shape = 'u8[65536]{0}', space=vmem, size = 0x10000, scoped, tag = 'input window, operand 1']
    #allocation4 [shape = 'u8[8192]{0}', space=vmem, size = 0x2000, scoped, tag = 'output window, operand 0']
    #allocation5 [shape = 's32[2]{0}', space=sflag, size = 0x8, scoped, tag = 'scoped memory for tpu_custom_call.1']
    %10 = vsyncpa [#allocation5], 0
    %s11 = scalar_lea.sflag [#allocation5], 1
    %12 = vsyncpa %s11, 0
    loop: start=0, step=1, limit=10
    $region2: #{tpu_custom_call.1} parent=1 // loop_pre_header
      _
    $region3: #{tpu_custom_call.1} parent=1 // loop_header
      %s14 = sphi 0, %s18
      %p15 = scmp.ge.s32.totalorder %s14, 10
      %s21 = sphi 0, %s33
      %s22 = sphi 0, %s29
      %s23 = sphi 0, %s21
      %s24 = sphi 0, %s22
      %s25 = sphi 0, %s23
      %s26 = sphi 0, %s24
      %s36 = sphi 0, %s38
      %s39 = sphi 0, %s36
      %s40 = sphi 0, %s39
      %s56 = sphi 0, %s40
      %s62 = sphi 0, %s64
      %s65 = sphi 0, %s62
      %s66 = sphi 0, %s65
      %s82 = sphi 0, %s66
      %s88 = sphi 0, %s90
      %s91 = sphi 0, %s88
      %s92 = sphi 0, %s91
      %s108 = sphi 0, %s92
      %s114 = sphi 0, %s116
      %s117 = sphi 0, %s114
      %s118 = sphi 0, %s117
      %s134 = sphi 0, %s118
      %s138 = sphi 0, %s138
      %s140 = sphi 0, %s138
      %s141 = sphi 0, %s140
      %s155 = sphi 0, %s141
      %s161 = sphi 0, %s163
      %s164 = sphi 0, %s161
      %s165 = sphi 0, %s164
      %s181 = sphi 0, %s165
    $region4: #{tpu_custom_call.1} parent=1 // loop_header_branch
      %17 = sbr.rel (%p15) target = $region8
    $region5: #{tpu_custom_call.1} parent=1 // loop_body
      %s19 = ssub.s32 %s14, 1
      %s20 = ssub.s32 %s14, 2
      %s27 = sadd.s32 1, %s22
      %p28 = scmp.ge.s32.totalorder %s27, 2
      %s29 = scalar_select %p28, 0, %s27
      %s30 = sadd.s32 1, %s21
      %s31 = scalar_select %p28, %s30, %s21
      %p32 = scmp.ge.s32.totalorder %s31, 4
      %s33 = scalar_select %p32, 0, %s31
      %s34 = ssub.s32 %s21, %s33
      %p35 = scmp.eq.s32.totalorder %s34, 0
      %s37 = sadd.s32 %s36, 1
      %s38 = scalar_select %p35, %s36, %s37
      %p41 = pneg %p35
      %p42 = scmp.eq.s32.totalorder %s14, 7
      %p43 = por %p41, %p42
      %p44 = scmp.ne.s32.totalorder %s36, %s39
      %p45 = scmp.eq.s32.totalorder %s14, 0
      %p46 = por %p44, %p45
      %p47 = scmp.ne.s32.totalorder %s36, %s39
      %p48 = scmp.eq.s32.totalorder %s19, 7
      %p49 = por %p47, %p48
      %p50 = scmp.ne.s32.totalorder %s39, %s40
      %p51 = scmp.eq.s32.totalorder %s19, 0
      %p52 = por %p50, %p51
      %p53 = scmp.ne.s32.totalorder %s39, %s40
      %p54 = scmp.eq.s32.totalorder %s20, 7
      %p55 = por %p53, %p54
      %p57 = scmp.ne.s32.totalorder %s40, %s56
      %p58 = scmp.eq.s32.totalorder %s20, 0
      %p59 = por %p57, %p58
      %s60 = ssub.s32 %s22, %s29
      %p61 = scmp.eq.s32.totalorder %s60, 0
      %s63 = sadd.s32 %s62, 1
      %s64 = scalar_select %p61, %s62, %s63
      %p67 = pneg %p61
      %p68 = scmp.eq.s32.totalorder %s14, 7
      %p69 = por %p67, %p68
      %p70 = scmp.ne.s32.totalorder %s62, %s65
      %p71 = scmp.eq.s32.totalorder %s14, 0
      %p72 = por %p70, %p71
      %p73 = scmp.ne.s32.totalorder %s62, %s65
      %p74 = scmp.eq.s32.totalorder %s19, 7
      %p75 = por %p73, %p74
      %p76 = scmp.ne.s32.totalorder %s65, %s66
      %p77 = scmp.eq.s32.totalorder %s19, 0
      %p78 = por %p76, %p77
      %p79 = scmp.ne.s32.totalorder %s65, %s66
      %p80 = scmp.eq.s32.totalorder %s20, 7
      %p81 = por %p79, %p80
      %p83 = scmp.ne.s32.totalorder %s66, %s82
      %p84 = scmp.eq.s32.totalorder %s20, 0
      %p85 = por %p83, %p84
      %s86 = ssub.s32 %s22, %s29
      %p87 = scmp.eq.s32.totalorder %s86, 0
      %s89 = sadd.s32 %s88, 1
      %s90 = scalar_select %p87, %s88, %s89
      %p93 = pneg %p87
      %p94 = scmp.eq.s32.totalorder %s14, 7
      %p95 = por %p93, %p94
      %p96 = scmp.ne.s32.totalorder %s88, %s91
      %p97 = scmp.eq.s32.totalorder %s14, 0
      %p98 = por %p96, %p97
      %p99 = scmp.ne.s32.totalorder %s88, %s91
      %p100 = scmp.eq.s32.totalorder %s19, 7
      %p101 = por %p99, %p100
      %p102 = scmp.ne.s32.totalorder %s91, %s92
      %p103 = scmp.eq.s32.totalorder %s19, 0
      %p104 = por %p102, %p103
      %p105 = scmp.ne.s32.totalorder %s91, %s92
      %p106 = scmp.eq.s32.totalorder %s20, 7
      %p107 = por %p105, %p106
      %p109 = scmp.ne.s32.totalorder %s92, %s108
      %p110 = scmp.eq.s32.totalorder %s20, 0
      %p111 = por %p109, %p110
      %s112 = ssub.s32 %s22, %s29
      %p113 = scmp.eq.s32.totalorder %s112, 0
      %s115 = sadd.s32 %s114, 1
      %s116 = scalar_select %p113, %s114, %s115
      %p119 = pneg %p113
      %p120 = scmp.eq.s32.totalorder %s14, 7
      %p121 = por %p119, %p120
      %p122 = scmp.ne.s32.totalorder %s114, %s117
      %p123 = scmp.eq.s32.totalorder %s14, 0
      %p124 = por %p122, %p123
      %p125 = scmp.ne.s32.totalorder %s114, %s117
      %p126 = scmp.eq.s32.totalorder %s19, 7
      %p127 = por %p125, %p126
      %p128 = scmp.ne.s32.totalorder %s117, %s118
      %p129 = scmp.eq.s32.totalorder %s19, 0
      %p130 = por %p128, %p129
      %p131 = scmp.ne.s32.totalorder %s117, %s118
      %p132 = scmp.eq.s32.totalorder %s20, 7
      %p133 = por %p131, %p132
      %p135 = scmp.ne.s32.totalorder %s118, %s134
      %p136 = scmp.eq.s32.totalorder %s20, 0
      %p137 = por %p135, %p136
      %s139 = sadd.s32 %s138, 1
      %p142 = scmp.eq.s32.totalorder %s14, 7
      %p143 = scmp.ne.s32.totalorder %s138, %s140
      %p144 = scmp.eq.s32.totalorder %s14, 0
      %p145 = por %p143, %p144
      %p146 = scmp.ne.s32.totalorder %s138, %s140
      %p147 = scmp.eq.s32.totalorder %s19, 7
      %p148 = por %p146, %p147
      %p149 = scmp.ne.s32.totalorder %s140, %s141
      %p150 = scmp.eq.s32.totalorder %s19, 0
      %p151 = por %p149, %p150
      %p152 = scmp.ne.s32.totalorder %s140, %s141
      %p153 = scmp.eq.s32.totalorder %s20, 7
      %p154 = por %p152, %p153
      %p156 = scmp.ne.s32.totalorder %s141, %s155
      %p157 = scmp.eq.s32.totalorder %s20, 0
      %p158 = por %p156, %p157
      %s159 = ssub.s32 %s21, %s33
      %p160 = scmp.eq.s32.totalorder %s159, 0
      %s162 = sadd.s32 %s161, 1
      %s163 = scalar_select %p160, %s161, %s162
      %p166 = pneg %p160
      %p167 = scmp.eq.s32.totalorder %s14, 7
      %p168 = por %p166, %p167
      %p169 = scmp.ne.s32.totalorder %s161, %s164
      %p170 = scmp.eq.s32.totalorder %s14, 0
      %p171 = por %p169, %p170
      %p172 = scmp.ne.s32.totalorder %s161, %s164
      %p173 = scmp.eq.s32.totalorder %s19, 7
      %p174 = por %p172, %p173
      %p175 = scmp.ne.s32.totalorder %s164, %s165
      %p176 = scmp.eq.s32.totalorder %s19, 0
      %p177 = por %p175, %p176
      %p178 = scmp.ne.s32.totalorder %s164, %s165
      %p179 = scmp.eq.s32.totalorder %s20, 7
      %p180 = por %p178, %p179
      %p182 = scmp.ne.s32.totalorder %s165, %s181
      %p183 = scmp.eq.s32.totalorder %s20, 0
      %p184 = por %p182, %p183
      %p185 = scmp.le.s32.totalorder 1, %s14
      %p186 = scmp.lt.s32.totalorder %s14, 9
      %p187 = pnand %p185, %p186
      %p188 = pneg %p187
      // Predicated region
      $region9: #{tpu_custom_call.1} parent=5 // pred_check
        _
      $region10: #{tpu_custom_call.1} parent=5 // pred_check_branch
        %190 = sbr.rel (%p187) target = $region12
      $region11: #{tpu_custom_call.1} parent=5 // pred_region
        %s191 = ssub.s32 %s14, 1
        // Predicated region
        $region13: #{tpu_custom_call.1} parent=11 // pred_check
          %p192 = pneg %p151
        $region14: #{tpu_custom_call.1} parent=11 // pred_check_branch
          %194 = sbr.rel (%p192) target = $region16
        $region15: #{tpu_custom_call.1} parent=11 // pred_region
          _
        $region16: #{tpu_custom_call.1} parent=11 // pred_fallthru
          _
      $region12: #{tpu_custom_call.1} parent=5 // pred_fallthru
        _
      %p195 = scmp.lt.s32.totalorder %s14, 8
      // Predicated region
      $region17: #{tpu_custom_call.1} parent=5 // pred_check
        %p196 = pneg %p195
      $region18: #{tpu_custom_call.1} parent=5 // pred_check_branch
        %198 = sbr.rel (%p196) target = $region20
      $region19: #{tpu_custom_call.1} parent=5 // pred_region
        // Predicated region
        $region21: #{tpu_custom_call.1} parent=19 // pred_check
          %p199 = pneg %p46
        $region22: #{tpu_custom_call.1} parent=19 // pred_check_branch
          %201 = sbr.rel (%p199) target = $region24
        $region23: #{tpu_custom_call.1} parent=19 // pred_region
          %p202 = scmp.lt.s32.totalorder %s21, 3
          %s203 = scalar_select %p202, %s21, 3
          %s204 = smul.addr %s203, 8
          %s205 = scalar_lea.vmem %s0, %s204
        $region24: #{tpu_custom_call.1} parent=19 // pred_fallthru
          _
        // Predicated region
        $region25: #{tpu_custom_call.1} parent=19 // pred_check
          %p206 = pneg %p72
        $region26: #{tpu_custom_call.1} parent=19 // pred_check_branch
          %208 = sbr.rel (%p206) target = $region28
        $region27: #{tpu_custom_call.1} parent=19 // pred_region
          %s209 = sand.u32 %s62, 1
          %s210 = sand.u32 %s62, 1
          %s211 = smul.addr %s210, 64
          %s212 = scalar_lea.vmem [#allocation3], %s211
          %s213 = smul.addr %s22, 8
          %s214 = scalar_lea.vmem %s1, %s213
          // Predicated region
          $region29: #{tpu_custom_call.1} parent=27 // pred_check
            _
          $region30: #{tpu_custom_call.1} parent=27 // pred_check_branch
            %216 = sbr.rel (0) target = $region32
          $region31: #{tpu_custom_call.1} parent=27 // pred_region
            // Predicated region
            $region33: #{tpu_custom_call.1} parent=31 // pred_check
              _
            $region34: #{tpu_custom_call.1} parent=31 // pred_check_branch
              %218 = sbr.rel (0) target = $region36
            $region35: #{tpu_custom_call.1} parent=31 // pred_region
              // Predicated region
              $region48: #{tpu_custom_call.1} parent=35 // pred_check
                _
              $region49: #{tpu_custom_call.1} parent=35 // pred_check_branch
                %247 = sbr.rel (0) target = $region51
              $region50: #{tpu_custom_call.1} parent=35 // pred_region
                loop: start=0, step=1, limit=1
                $region52: #{tpu_custom_call.1} parent=50 // loop_pre_header
                  _
                $region53: #{tpu_custom_call.1} parent=50 // loop_header
                  %s249 = sphi 0, %s253
                  %p250 = scmp.ge.s32.totalorder %s249, 1
                  %s254 = sphi %s214, %s214
                  %s255 = sphi %s212, %s212
                $region54: #{tpu_custom_call.1} parent=50 // loop_header_branch
                  %252 = sbr.rel (%p250) target = $region58
                $region55: #{tpu_custom_call.1} parent=50 // loop_body
                  %v256 = vld [vmem:[%s254] sm:$0xff]
                  %257 = vst [vmem:[%s255] sm:$0xff] %v256
                  %v258 = vld [vmem:[%s254 + $0x10] sm:$0xff]
                  %259 = vst [vmem:[%s255 + $0x8] sm:$0xff] %v258
                  %v260 = vld [vmem:[%s254 + $0x20] sm:$0xff]
                  %261 = vst [vmem:[%s255 + $0x10] sm:$0xff] %v260
                  %v262 = vld [vmem:[%s254 + $0x30] sm:$0xff]
                  %263 = vst [vmem:[%s255 + $0x18] sm:$0xff] %v262
                  %v264 = vld [vmem:[%s254 + $0x40] sm:$0xff]
                  %265 = vst [vmem:[%s255 + $0x20] sm:$0xff] %v264
                  %v266 = vld [vmem:[%s254 + $0x50] sm:$0xff]
                  %267 = vst [vmem:[%s255 + $0x28] sm:$0xff] %v266
                  %v268 = vld [vmem:[%s254 + $0x60] sm:$0xff]
                  %269 = vst [vmem:[%s255 + $0x30] sm:$0xff] %v268
                  %v270 = vld [vmem:[%s254 + $0x70] sm:$0xff]
                  %271 = vst [vmem:[%s255 + $0x38] sm:$0xff] %v270
                $region56: #{tpu_custom_call.1} parent=50 // loop_footer
                  %s253 = sadd.s32 1, %s249
                $region57: #{tpu_custom_call.1} parent=50 // loop_footer_branch
                  %248 = sbr.rel target = $region53
                $region58: #{tpu_custom_call.1} parent=50 // loop_exit
                  _
              $region51: #{tpu_custom_call.1} parent=35 // pred_fallthru
                _
              // Predicated region
              $region59: #{tpu_custom_call.1} parent=35 // pred_check
                _
              $region60: #{tpu_custom_call.1} parent=35 // pred_check_branch
                %273 = sbr.rel target = $region62
              $region61: #{tpu_custom_call.1} parent=35 // pred_region
                _
              $region62: #{tpu_custom_call.1} parent=35 // pred_fallthru
                _
            $region36: #{tpu_custom_call.1} parent=31 // pred_fallthru
              _
            // Predicated region
            $region37: #{tpu_custom_call.1} parent=31 // pred_check
              _
            $region38: #{tpu_custom_call.1} parent=31 // pred_check_branch
              %220 = sbr.rel target = $region40
            $region39: #{tpu_custom_call.1} parent=31 // pred_region
              loop: start=0, step=1, limit=1
              $region41: #{tpu_custom_call.1} parent=39 // loop_pre_header
                _
              $region42: #{tpu_custom_call.1} parent=39 // loop_header
                %s223 = sphi 0, %s227
                %p224 = scmp.ge.s32.totalorder %s223, 1
                %s228 = sphi %s214, %s214
                %s229 = sphi %s212, %s212
              $region43: #{tpu_custom_call.1} parent=39 // loop_header_branch
                %226 = sbr.rel (%p224) target = $region47
              $region44: #{tpu_custom_call.1} parent=39 // loop_body
                %v230 = vld [vmem:[%s228] sm:$0xff]
                %231 = vst [vmem:[%s229] sm:$0xff] %v230
                %v232 = vld [vmem:[%s228 + $0x10] sm:$0xff]
                %233 = vst [vmem:[%s229 + $0x8] sm:$0xff] %v232
                %v234 = vld [vmem:[%s228 + $0x20] sm:$0xff]
                %235 = vst [vmem:[%s229 + $0x10] sm:$0xff] %v234
                %v236 = vld [vmem:[%s228 + $0x30] sm:$0xff]
                %237 = vst [vmem:[%s229 + $0x18] sm:$0xff] %v236
                %v238 = vld [vmem:[%s228 + $0x40] sm:$0xff]
                %239 = vst [vmem:[%s229 + $0x20] sm:$0xff] %v238
                %v240 = vld [vmem:[%s228 + $0x50] sm:$0xff]
                %241 = vst [vmem:[%s229 + $0x28] sm:$0xff] %v240
                %v242 = vld [vmem:[%s228 + $0x60] sm:$0xff]
                %243 = vst [vmem:[%s229 + $0x30] sm:$0xff] %v242
                %v244 = vld [vmem:[%s228 + $0x70] sm:$0xff]
                %245 = vst [vmem:[%s229 + $0x38] sm:$0xff] %v244
              $region45: #{tpu_custom_call.1} parent=39 // loop_footer
                %s227 = sadd.s32 1, %s223
              $region46: #{tpu_custom_call.1} parent=39 // loop_footer_branch
                %222 = sbr.rel target = $region42
              $region47: #{tpu_custom_call.1} parent=39 // loop_exit
                _
            $region40: #{tpu_custom_call.1} parent=31 // pred_fallthru
              _
          $region32: #{tpu_custom_call.1} parent=27 // pred_fallthru
            _
          %274 = vnop
        $region28: #{tpu_custom_call.1} parent=19 // pred_fallthru
          _
        // Predicated region
        $region63: #{tpu_custom_call.1} parent=19 // pred_check
          %p275 = pneg %p98
        $region64: #{tpu_custom_call.1} parent=19 // pred_check_branch
          %277 = sbr.rel (%p275) target = $region66
        $region65: #{tpu_custom_call.1} parent=19 // pred_region
          %p278 = scmp.lt.s32.totalorder %s22, 1
          %s279 = scalar_select %p278, %s22, 1
          %s280 = scalar_lea.vmem %s2, %s279
        $region66: #{tpu_custom_call.1} parent=19 // pred_fallthru
          _
        // Predicated region
        $region67: #{tpu_custom_call.1} parent=19 // pred_check
          %p281 = pneg %p124
        $region68: #{tpu_custom_call.1} parent=19 // pred_check_branch
          %283 = sbr.rel (%p281) target = $region70
        $region69: #{tpu_custom_call.1} parent=19 // pred_region
          %s284 = smul.u32 16, %s22
          %p285 = scmp.lt.s32.totalorder %s284, 31
          %s286 = scalar_select %p285, %s284, 31
          %s287 = smul.addr %s286, 8
          %s288 = scalar_lea.vmem %s3, %s287
          %s289 = smul.u32 16, %s22
        $region70: #{tpu_custom_call.1} parent=19 // pred_fallthru
          _
      $region20: #{tpu_custom_call.1} parent=5 // pred_fallthru
        _
      %p290 = scmp.le.s32.totalorder 1, %s14
      %p291 = scmp.lt.s32.totalorder %s14, 9
      %p292 = pnand %p290, %p291
      %p293 = pneg %p292
      // Predicated region
      $region71: #{tpu_custom_call.1} parent=5 // pred_check
        _
      $region72: #{tpu_custom_call.1} parent=5 // pred_check_branch
        %295 = sbr.rel (%p292) target = $region74
      $region73: #{tpu_custom_call.1} parent=5 // pred_region
        %s296 = ssub.s32 %s14, 1
        %s297 = sand.u32 %s65, 1
        %s298 = sand.u32 %s65, 1
        %s299 = smul.addr %s298, 64
        %s300 = scalar_lea.vmem [#allocation3], %s299
        // Predicated region
        $region75: #{tpu_custom_call.1} parent=73 // pred_check
          %p301 = pneg %p78
        $region76: #{tpu_custom_call.1} parent=73 // pred_check_branch
          %303 = sbr.rel (%p301) target = $region78
        $region77: #{tpu_custom_call.1} parent=73 // pred_region
          _
        $region78: #{tpu_custom_call.1} parent=73 // pred_fallthru
          _
        %p304 = scmp.lt.s32.totalorder %s23, 3
        %s305 = scalar_select %p304, %s23, 3
        %s306 = smul.addr %s305, 8
        %s307 = scalar_lea.vmem %s0, %s306
        %p308 = pneg %p52
        %p309 = pneg %p49
        %s310 = sand.u32 %s65, 1
        %s311 = sand.u32 %s65, 1
        %s312 = smul.addr %s311, 64
        %s313 = scalar_lea.vmem [#allocation3], %s312
        %p314 = pneg %p78
        %p315 = pneg %p75
        %p316 = scmp.lt.s32.totalorder %s24, 1
        %s317 = scalar_select %p316, %s24, 1
        %s318 = scalar_lea.vmem %s2, %s317
        %p319 = pneg %p104
        %p320 = pneg %p101
        %s321 = smul.u32 16, %s24
        %p322 = scmp.lt.s32.totalorder %s321, 31
        %s323 = scalar_select %p322, %s321, 31
        %s324 = smul.addr %s323, 8
        %s325 = scalar_lea.vmem %s3, %s324
        %p326 = pneg %p130
        %p327 = pneg %p127
        %p328 = pneg %p151
        %p329 = pneg %p148
        %p330 = pneg %p177
        %p331 = pneg %p174
        %s332 = sand.u32 %s164, 1
        %s333 = scalar_lea.sflag [#allocation5], %s332
        %s334 = sand.u32 %s164, 1
        %s335 = smul.addr %s334, 8
        %s336 = scalar_lea.vmem [#allocation4], %s335
        %p337 = scmp.lt.s32.totalorder %s23, 3
        %s338 = scalar_select %p337, %s23, 3
        %s339 = smul.addr %s338, 8
        %s340 = scalar_lea.vmem %s0, %s339
        %p341 = scmp.lt.s32.totalorder %s24, 1
        %s342 = scalar_select %p341, %s24, 1
        %s343 = scalar_lea.vmem %s2, %s342
        %s344 = smul.u32 16, %s24
        %p345 = scmp.lt.s32.totalorder %s344, 31
        %s346 = scalar_select %p345, %s344, 31
        %s347 = smul.addr %s346, 8
        %s348 = scalar_lea.vmem %s3, %s347
        %s349 = smul.u32 16, %s24
        %p350 = scmp.eq.s32.totalorder %s24, 0
        // Predicated region
        $region79: #{tpu_custom_call.1} parent=73 // pred_check
          %p351 = pneg %p350
        $region80: #{tpu_custom_call.1} parent=73 // pred_check_branch
          %353 = sbr.rel (%p351) target = $region82
        $region81: #{tpu_custom_call.1} parent=73 // pred_region
          %vm354 = vcmask 523264
          %355 = vst.msk [vmem:[#allocation2] sm:$0xff] %vm354, 0.0
        $region82: #{tpu_custom_call.1} parent=73 // pred_fallthru
          _
        %v356 = vld [vmem:[%s340] sm:$0xff]
        %v357 = vld [vmem:[%s300] sm:$0xff]
        %v358 = vld [vmem:[%s300 + $0x8] sm:$0xff]
        %v359 = vld [vmem:[%s300 + $0x10] sm:$0xff]
        %v360 = vld [vmem:[%s300 + $0x18] sm:$0xff]
        %v361 = vld [vmem:[%s300 + $0x20] sm:$0xff]
        %v362 = vld [vmem:[%s300 + $0x28] sm:$0xff]
        %v363 = vld [vmem:[%s300 + $0x30] sm:$0xff]
        %v364 = vld [vmem:[%s300 + $0x38] sm:$0xff]
        %v365 = vld [vmem:[%s343] sm:$0x1]
        %v367 = vlaneseq
        %v368 = vshrl.u32 %v367, 7
        %v369 = vsub.s32 0, %v368
        %v370 = vrot.slane %v365, %v369
        %vm372 = vcmask 523264
        %v374 = vsel %vm372, %v356, 0
        %376 = vmatprep.subr.mxu0 0.0
        %377 = vmatpush1.msra.mxu0 %v357
        %378 = vmatprep.subr.mxu0 0.0
        %379 = vmatpush1.msra.mxu0 %v358
        %380 = vmatprep.subr.mxu0 0.0
        %381 = vmatpush1.msra.mxu0 %v359
        %382 = vmatprep.subr.mxu0 0.0
        %383 = vmatpush1.msra.mxu0 %v360
        %384 = vmatprep.subr.mxu0 0.0
        %385 = vmatpush1.msra.mxu0 %v361
        %386 = vmatprep.subr.mxu0 0.0
        %387 = vmatpush1.msra.mxu0 %v362
        %388 = vmatprep.subr.mxu0 0.0
        %389 = vmatpush1.msra.mxu0 %v363
        %390 = vmatprep.subr.mxu0 0.0
        %391 = vmatpush1.msra.mxu0 %v364
        %392 = vmatprep.subr.mxu0 0.0
        %393 = vmatpush1.msra.mxu0 0.0
        %394 = vmatprep.subr.mxu0 0.0
        %395 = vmatpush1.msra.mxu0 0.0
        %396 = vmatprep.subr.mxu0 0.0
        %397 = vmatpush1.msra.mxu0 0.0
        %398 = vmatprep.subr.mxu0 0.0
        %399 = vmatpush1.msra.mxu0 0.0
        %400 = vmatprep.subr.mxu0 0.0
        %401 = vmatpush1.msra.mxu0 0.0
        %402 = vmatprep.subr.mxu0 0.0
        %403 = vmatpush1.msra.mxu0 0.0
        %404 = vmatprep.subr.mxu0 0.0
        %405 = vmatpush1.msra.mxu0 0.0
        %406 = vmatprep.subr.mxu0 0.0
        %407 = vmatpush1.msra.mxu0 0.0
        %408 = vmatprep.subr.mxu0 0.0
        %409 = vmatpush1.msra.mxu0 0.0
        %410 = vmatprep.subr.mxu0 0.0
        %411 = vmatpush1.msra.mxu0 0.0
        %412 = vmatprep.subr.mxu0 0.0
        %413 = vmatpush1.msra.mxu0 0.0
        %414 = vmatprep.subr.mxu0 0.0
        %415 = vmatpush1.msra.mxu0 0.0
        %416 = vmatprep.subr.mxu0 0.0
        %417 = vmatpush1.msra.mxu0 0.0
        %418 = vmatprep.subr.mxu0 0.0
        %419 = vmatpush1.msra.mxu0 0.0
        %420 = vmatprep.subr.mxu0 0.0
        %421 = vmatpush1.msra.mxu0 0.0
        %422 = vmatprep.subr.mxu0 0.0
        %423 = vmatpush1.msra.mxu0 0.0
        %424 = vmatprep.subr.mxu0 0.0
        %425 = vmatpush1.msra.mxu0 0.0
        %426 = vmatprep.subr.mxu0 0.0
        %427 = vmatpush1.msra.mxu0 0.0
        %428 = vmatprep.subr.mxu0 0.0
        %429 = vmatpush1.msra.mxu0 0.0
        %430 = vmatprep.subr.mxu0 0.0
        %431 = vmatpush1.msra.mxu0 0.0
        %432 = vmatprep.subr.mxu0 0.0
        %433 = vmatpush1.msra.mxu0 0.0
        %434 = vmatprep.subr.mxu0 0.0
        %435 = vmatpush1.msra.mxu0 0.0
        %436 = vmatprep.subr.mxu0 0.0
        %437 = vmatpush1.msra.mxu0 0.0
        %438 = vmatprep.subr.mxu0 0.0
        %439 = vmatpush1.msra.mxu0 0.0
        %440 = vmatprep.mubr.f32.mxu0 0.0
        %441 = vmatmul.mubr.f32.gmra.mrb[0].mxu0 %v374
        %v442 = vpop.f32.mrb[0].mxu0
        %v443 = vadd.f32 %v370, %v442
        %v444 = vpop.f32.mrb[0].mxu0
        %445 = vdwg.mxu0
        %v446 = vxor.u32 %v443, 2147483648
        %v447 = vmul.f32 %v446, 1.442695
        %v448 = vpow.pop %v447
        %v449 = vadd.f32 %v448, 1.0
        %v450 = vrcp.pop %v449
        %v451 = vmul.f32 1.0, %v450
        %v452 = vmul.f32 %v443, %v451
        %v453 = vld [vmem:[#allocation2] sm:$0xff]
        %v454 = vld [vmem:[%s348] sm:$0xff]
        %v455 = vld [vmem:[%s348 + $0x8] sm:$0xff]
        %v456 = vld [vmem:[%s348 + $0x10] sm:$0xff]
        %v457 = vld [vmem:[%s348 + $0x18] sm:$0xff]
        %v458 = vld [vmem:[%s348 + $0x20] sm:$0xff]
        %v459 = vld [vmem:[%s348 + $0x28] sm:$0xff]
        %v460 = vld [vmem:[%s348 + $0x30] sm:$0xff]
        %v461 = vld [vmem:[%s348 + $0x38] sm:$0xff]
        %v462 = vld [vmem:[%s348 + $0x40] sm:$0xff]
        %v463 = vld [vmem:[%s348 + $0x48] sm:$0xff]
        %v464 = vld [vmem:[%s348 + $0x50] sm:$0xff]
        %v465 = vld [vmem:[%s348 + $0x58] sm:$0xff]
        %v466 = vld [vmem:[%s348 + $0x60] sm:$0xff]
        %v467 = vld [vmem:[%s348 + $0x68] sm:$0xff]
        %v468 = vld [vmem:[%s348 + $0x70] sm:$0xff]
        %v469 = vld [vmem:[%s348 + $0x78] sm:$0xff]
        %470 = vmatprep.subr.mxu0 0.0
        %471 = vmatpush1.msra.mxu0 %v454
        %472 = vmatprep.subr.mxu0 0.0
        %473 = vmatpush1.msra.mxu0 %v455
        %474 = vmatprep.subr.mxu0 0.0
        %475 = vmatpush1.msra.mxu0 %v456
        %476 = vmatprep.subr.mxu0 0.0
        %477 = vmatpush1.msra.mxu0 %v457
        %478 = vmatprep.subr.mxu0 0.0
        %479 = vmatpush1.msra.mxu0 %v458
        %480 = vmatprep.subr.mxu0 0.0
        %481 = vmatpush1.msra.mxu0 %v459
        %482 = vmatprep.subr.mxu0 0.0
        %483 = vmatpush1.msra.mxu0 %v460
        %484 = vmatprep.subr.mxu0 0.0
        %485 = vmatpush1.msra.mxu0 %v461
        %486 = vmatprep.subr.mxu0 0.0
        %487 = vmatpush1.msra.mxu0 %v462
        %488 = vmatprep.subr.mxu0 0.0
        %489 = vmatpush1.msra.mxu0 %v463
        %490 = vmatprep.subr.mxu0 0.0
        %491 = vmatpush1.msra.mxu0 %v464
        %492 = vmatprep.subr.mxu0 0.0
        %493 = vmatpush1.msra.mxu0 %v465
        %494 = vmatprep.subr.mxu0 0.0
        %495 = vmatpush1.msra.mxu0 %v466
        %496 = vmatprep.subr.mxu0 0.0
        %497 = vmatpush1.msra.mxu0 %v467
        %498 = vmatprep.subr.mxu0 0.0
        %499 = vmatpush1.msra.mxu0 %v468
        %500 = vmatprep.subr.mxu0 0.0
        %501 = vmatpush1.msra.mxu0 %v469
        %502 = vmatprep.subr.mxu0 0.0
        %503 = vmatpush1.msra.mxu0 0.0
        %504 = vmatprep.subr.mxu0 0.0
        %505 = vmatpush1.msra.mxu0 0.0
        %506 = vmatprep.subr.mxu0 0.0
        %507 = vmatpush1.msra.mxu0 0.0
        %508 = vmatprep.subr.mxu0 0.0
        %509 = vmatpush1.msra.mxu0 0.0
        %510 = vmatprep.subr.mxu0 0.0
        %511 = vmatpush1.msra.mxu0 0.0
        %512 = vmatprep.subr.mxu0 0.0
        %513 = vmatpush1.msra.mxu0 0.0
        %514 = vmatprep.subr.mxu0 0.0
        %515 = vmatpush1.msra.mxu0 0.0
        %516 = vmatprep.subr.mxu0 0.0
        %517 = vmatpush1.msra.mxu0 0.0
        %518 = vmatprep.subr.mxu0 0.0
        %519 = vmatpush1.msra.mxu0 0.0
        %520 = vmatprep.subr.mxu0 0.0
        %521 = vmatpush1.msra.mxu0 0.0
        %522 = vmatprep.subr.mxu0 0.0
        %523 = vmatpush1.msra.mxu0 0.0
        %524 = vmatprep.subr.mxu0 0.0
        %525 = vmatpush1.msra.mxu0 0.0
        %526 = vmatprep.subr.mxu0 0.0
        %527 = vmatpush1.msra.mxu0 0.0
        %528 = vmatprep.subr.mxu0 0.0
        %529 = vmatpush1.msra.mxu0 0.0
        %530 = vmatprep.subr.mxu0 0.0
        %531 = vmatpush1.msra.mxu0 0.0
        %532 = vmatprep.subr.mxu0 0.0
        %533 = vmatpush1.msra.mxu0 0.0
        %534 = vmatprep.mubr.f32.mxu0 0.0
        %535 = vmatmul.mubr.f32.gmra.mrb[0].mxu0 %v452
        %v536 = vpop.f32.mrb[0].mxu0
        %v537 = vadd.f32 0.0, %v536
        %v538 = vpop.f32.mrb[0].mxu0
        %539 = vdwg.mxu0
        %v540 = vadd.f32 %v453, %v537
        %541 = vst.msk [vmem:[#allocation2] sm:$0xff] %vm372, %v540
        %p542 = scmp.eq.s32.totalorder %s24, 1
        // Predicated region
        $region83: #{tpu_custom_call.1} parent=73 // pred_check
          %p543 = pneg %p542
        $region84: #{tpu_custom_call.1} parent=73 // pred_check_branch
          %545 = sbr.rel (%p543) target = $region86
        $region85: #{tpu_custom_call.1} parent=73 // pred_region
          %v546 = vld [vmem:[#allocation2] sm:$0xff]
          %v547 = vld [vmem:[%s4] sm:$0x1]
          %v549 = vlaneseq
          %v550 = vshrl.u32 %v549, 7
          %v551 = vsub.s32 0, %v550
          %v552 = vrot.slane %v547, %v551
          %v554 = vadd.f32 %v546, %v552
          %555 = vst.msk [vmem:[%s336] sm:$0xff] %vm372, %v554
        $region86: #{tpu_custom_call.1} parent=73 // pred_fallthru
          _
        %s556 = sand.u32 %s164, 1
        %s557 = scalar_lea.sflag [#allocation5], %s556
        %s558 = sand.u32 %s164, 1
        %s559 = smul.addr %s558, 8
        %s560 = scalar_lea.vmem [#allocation4], %s559
        // Predicated region
        $region87: #{tpu_custom_call.1} parent=73 // pred_check
          %p561 = pneg %p174
        $region88: #{tpu_custom_call.1} parent=73 // pred_check_branch
          %563 = sbr.rel (%p561) target = $region90
        $region89: #{tpu_custom_call.1} parent=73 // pred_region
          %s565 = ssub.s32 128, 128
          %566 = vsyncadd %s557, %s565
          %s567 = smul.addr %s23, 128
          %s568 = scalar_lea.hbm %s5, %s567
          %s570 = sshll.u32 %s560, 4
          %s571 = int_to_ptr.vmem [resolvable:$true] %s570
          %573 = dma.vmem_to_hbm [thread:$0]  %s571, 128, %s568, %s557
        $region90: #{tpu_custom_call.1} parent=73 // pred_fallthru
          _
      $region74: #{tpu_custom_call.1} parent=5 // pred_fallthru
        _
      %p574 = scmp.le.s32.totalorder 2, %s14
      // Predicated region
      $region91: #{tpu_custom_call.1} parent=5 // pred_check
        %p575 = pneg %p574
      $region92: #{tpu_custom_call.1} parent=5 // pred_check_branch
        %577 = sbr.rel (%p575) target = $region94
      $region93: #{tpu_custom_call.1} parent=5 // pred_region
        %s578 = ssub.s32 %s14, 2
        // Predicated region
        $region95: #{tpu_custom_call.1} parent=93 // pred_check
          %p579 = pneg %p180
        $region96: #{tpu_custom_call.1} parent=93 // pred_check_branch
          %581 = sbr.rel (%p579) target = $region98
        $region97: #{tpu_custom_call.1} parent=93 // pred_region
          %s582 = sand.u32 %s165, 1
          %s583 = scalar_lea.sflag [#allocation5], %s582
          %s584 = sand.u32 %s165, 1
          %s585 = smul.addr %s584, 8
          %s586 = scalar_lea.vmem [#allocation4], %s585
          %587 = dma.done %s583, 128
        $region98: #{tpu_custom_call.1} parent=93 // pred_fallthru
          _
      $region94: #{tpu_custom_call.1} parent=5 // pred_fallthru
        _
    $region6: #{tpu_custom_call.1} parent=1 // loop_footer
      %s18 = sadd.s32 1, %s14
    $region7: #{tpu_custom_call.1} parent=1 // loop_footer_branch
      %13 = sbr.rel target = $region3
    $region8: #{tpu_custom_call.1} parent=1 // loop_exit
      _
    %588 = vsyncpa [#allocation5], 1
    %s589 = scalar_lea.sflag [#allocation5], 1
    %590 = vsyncpa %s589, 1

</llo_original>
